<compile_context>
chip_gen: v6e
topology: v6e:2x2x1
jax: 0.10.0
libtpu: 0.0.40
codegen_flags: <defaults>
</compile_context>

<pallas_src>
import functools

import jax
import jax.numpy as jnp
from jax.experimental import pallas as pl
from jax.experimental.pallas import tpu as pltpu


_SQRT_2_OVER_PI = 0.7978845608028654


def _gelu_new(x):
    # HF "gelu_new" / tanh-approximate GELU (dense_act_fn for gated-gelu T5).
    return 0.5 * x * (1.0 + jnp.tanh(_SQRT_2_OVER_PI * (x + 0.044715 * x * x * x)))


def _t5_ffn_kernel(x_ref, wi0_ref, wi1_ref, wo_ref, o_ref, acc_ref):
    # x_ref   : (tm, d_model)   row tile of flattened hidden states
    # wi0_ref : (d_model, tff)  d_ff-slab of Wi0
    # wi1_ref : (d_model, tff)  d_ff-slab of Wi1
    # wo_ref  : (tff, d_model)  d_ff-slab of Wo
    # o_ref   : (tm, d_model)   output tile (written on last k step)
    # acc_ref : (tm, d_model)   f32 accumulator scratch (resident across k)
    k = pl.program_id(1)

    @pl.when(k == 0)
    def _():
        acc_ref[...] = jnp.zeros_like(acc_ref)

    x = x_ref[...]  # native dtype straight into the MXU, f32 accumulation
    h0 = jnp.dot(x, wi0_ref[...], preferred_element_type=jnp.float32)
    h1 = jnp.dot(x, wi1_ref[...], preferred_element_type=jnp.float32)
    g = _gelu_new(h0) * h1  # elementwise math in f32
    # TODO(synk): dropout omitted (eval-mode identity; config.dropout_rate unused).
    acc_ref[...] += jnp.dot(g.astype(wo_ref.dtype), wo_ref[...],
                            preferred_element_type=jnp.float32)

    @pl.when(k == pl.num_programs(1) - 1)
    def _():
        o_ref[...] = acc_ref[...].astype(o_ref.dtype)


def _round_up(x, m):
    return ((x + m - 1) // m) * m


def _tpu_generation():
    try:
        kind = jax.devices()[0].device_kind.lower()
    except Exception:
        return "unknown"
    if "v7" in kind or "7x" in kind:
        return "v7x"
    if "v6" in kind:
        return "v6e"
    if "v5" in kind:
        return "v5"
    if "v4" in kind:
        return "v4"
    return "unknown"


def _hw_defaults(gen):
    """(target_tm, target_tff, vmem_limit_bytes) per TPU generation."""
    if gen == "v7x":
        # 64 MiB physical VMEM per TensorCore: never ask for all of it.
        return 768, 256, 56 * 1024 * 1024
    if gen == "v6e":
        # Compute/BW crossover ~650 FLOPs/B -> need tm ~1024; 128 MiB VMEM.
        return 1024, 512, 100 * 1024 * 1024
    if gen in ("v5", "v4"):
        # v5e crossover ~240 FLOPs/B: tm=256 near roofline; grow tff instead.
        return 256, 1024, 100 * 1024 * 1024
    # Unknown hardware: conservative tiles / cap (fits a 64 MiB-VMEM part).
    return 512, 256, 48 * 1024 * 1024


def _pick_tff(d_ff, target):
    """Largest multiple of 128 dividing d_ff and <= target (avoids weight padding)."""
    if d_ff <= target:
        return d_ff
    best = 0
    for cand in range(128, target + 1, 128):
        if d_ff % cand == 0:
            best = cand
    if best:
        return best
    # Fallback: pad d_ff (costs one extra HBM copy of the weights per call).
    return target


def _vmem_estimate(tm, tff, d_model, x_itemsize, w_itemsize):
    """Double-buffered working set + scratch + f32 intermediates, in bytes."""
    b = 0
    b += 2 * tm * d_model * x_itemsize        # x tile, double-buffered
    b += 2 * tm * d_model * x_itemsize        # out tile, double-buffered
    b += 2 * 2 * d_model * tff * w_itemsize   # Wi0 + Wi1 slabs, double-buffered
    b += 2 * tff * d_model * w_itemsize       # Wo slab, double-buffered
    b += tm * d_model * 4                     # f32 accumulator scratch
    b += 3 * tm * tff * 4                     # f32 h0 / h1 / g intermediates
    return b


@functools.partial(jax.jit, static_argnames=("tm", "tff"))
def t5_feedforward(hidden_states, wi0, wi1, wo, *, tm=None, tff=None):
    """hidden_states: [B, S, d_model]; wi0/wi1: [d_model, d_ff]; wo: [d_ff, d_model]."""
    B, S, d_model = hidden_states.shape
    d_ff = wi0.shape[1]
    M = B * S
    x2d = hidden_states.reshape(M, d_model)

    gen = _tpu_generation()
    tm_t, tff_t, vmem_limit = _hw_defaults(gen)

    auto_tm = tm is None
    auto_tff = tff is None
    if auto_tm:
        tm = tm_t
        # Clamp to the row count; on v7x keep >=2 row tiles so both
        # TensorCores get work under megacore ("parallel") sharding.
        if gen == "v7x" and M > 8:
            tm = min(tm, _round_up(pl.cdiv(M, 2), 8))
        else:
            tm = min(tm, _round_up(M, 8))
    tff_target = tff_t if auto_tff else tff

    # Shrink auto tiles until the working set fits the scoped-VMEM cap
    # (matters for very large d_model, especially on v7x's 64 MiB VMEM).
    xb = x2d.dtype.itemsize
    wb = wi0.dtype.itemsize
    if auto_tm or auto_tff:
        while _vmem_estimate(tm, min(tff_target, d_ff), d_model, xb, wb) > 0.85 * vmem_limit:
            if auto_tm and tm > 256 and tm >= tff_target:
                tm = max(8, _round_up(tm // 2, 8))
            elif auto_tff and tff_target > 128:
                tff_target //= 2
            elif auto_tm and tm > 64:
                tm = max(8, _round_up(tm // 2, 8))
            else:
                break
    if auto_tff:
        tff = _pick_tff(d_ff, tff_target)
    else:
        tff = tff_target

    # Pad rows (cheap). Weight padding is only a fallback when tff ∤ d_ff.
    Mp = _round_up(M, tm)
    Fp = _round_up(d_ff, tff)
    if Mp != M:
        x2d = jnp.pad(x2d, ((0, Mp - M), (0, 0)))
    if Fp != d_ff:
        wi0 = jnp.pad(wi0, ((0, 0), (0, Fp - d_ff)))
        wi1 = jnp.pad(wi1, ((0, 0), (0, Fp - d_ff)))
        wo = jnp.pad(wo, ((0, Fp - d_ff), (0, 0)))

    grid = (Mp // tm, Fp // tff)

    cost = pl.CostEstimate(
        flops=6 * M * d_model * d_ff,
        transcendentals=M * d_ff,
        bytes_accessed=2 * M * d_model * xb + grid[0] * 3 * d_model * Fp * wb,
    )

    out2d = pl.pallas_call(
        _t5_ffn_kernel,
        out_shape=jax.ShapeDtypeStruct((Mp, d_model), hidden_states.dtype),
        grid_spec=pltpu.PrefetchScalarGridSpec(
            num_scalar_prefetch=0,
            grid=grid,
            in_specs=[
                pl.BlockSpec((tm, d_model), lambda i, k: (i, 0)),   # x row tile
                pl.BlockSpec((d_model, tff), lambda i, k: (0, k)),  # Wi0 slab
                pl.BlockSpec((d_model, tff), lambda i, k: (0, k)),  # Wi1 slab
                pl.BlockSpec((tff, d_model), lambda i, k: (k, 0)),  # Wo  slab
            ],
            out_specs=pl.BlockSpec((tm, d_model), lambda i, k: (i, 0)),
            scratch_shapes=[pltpu.VMEM((tm, d_model), jnp.float32)],
        ),
        compiler_params=pltpu.CompilerParams(
            dimension_semantics=("parallel", "arbitrary"),
            vmem_limit_bytes=vmem_limit,
        ),
        cost_estimate=cost,
    )(x2d, wi0, wi1, wo)

    if Mp != M:
        out2d = out2d[:M]
    return out2d.reshape(B, S, d_model)


def _reference(hidden_states, wi0, wi1, wo):
    x = hidden_states.astype(jnp.float32)
    h0 = _gelu_new(x @ wi0.astype(jnp.float32))
    h1 = x @ wi1.astype(jnp.float32)
    return ((h0 * h1) @ wo.astype(jnp.float32)).astype(hidden_states.dtype)


if __name__ == "__main__":
    key = jax.random.PRNGKey(0)
    keys = jax.random.split(key, 8)

    # --- test 1: small config, auto hardware-aware tiling --------------------
    B, S, d_model, d_ff = 2, 8, 32, 64
    hidden_states = jax.random.normal(keys[0], (B, S, d_model), dtype=jnp.float32)
    wi0 = jax.random.normal(keys[1], (d_model, d_ff), dtype=jnp.float32) * 0.05
    wi1 = jax.random.normal(keys[2], (d_model, d_ff), dtype=jnp.float32) * 0.05
    wo = jax.random.normal(keys[3], (d_ff, d_model), dtype=jnp.float32) * 0.05

    out = jax.block_until_ready(t5_feedforward(hidden_states, wi0, wi1, wo))
    ref = _reference(hidden_states, wi0, wi1, wo)
    assert out.shape == (B, S, d_model)
    assert jnp.allclose(out, ref, atol=2e-4, rtol=2e-4), "test1 mismatch vs reference"

    # --- test 2: ragged M (M % tm != 0) and ragged d_ff (d_ff % tff != 0),
    #             forced multi-tile grid to exercise accumulation + padding ---
    B2, S2, d_model2, d_ff2 = 2, 20, 128, 320   # M=40, 3 k-steps at tff=128
    hs2 = jax.random.normal(keys[4], (B2, S2, d_model2), dtype=jnp.float32)
    w02 = jax.random.normal(keys[5], (d_model2, d_ff2), dtype=jnp.float32) * 0.05
    w12 = jax.random.normal(keys[6], (d_model2, d_ff2), dtype=jnp.float32) * 0.05
    wo2 = jax.random.normal(keys[7], (d_ff2, d_model2), dtype=jnp.float32) * 0.05

    out2 = jax.block_until_ready(t5_feedforward(hs2, w02, w12, wo2, tm=16, tff=128))
    ref2 = _reference(hs2, w02, w12, wo2)
    assert out2.shape == (B2, S2, d_model2)
    assert jnp.allclose(out2, ref2, atol=2e-4, rtol=2e-4), "test2 mismatch vs reference"

    print("KERNEL_OK")
</pallas_src>

<mosaic_0001>
module attributes {stable_mosaic.version = 11 : i64} {
  func.func @_t5_ffn_kernel(%arg0: i32, %arg1: i32, %arg2: memref<16x32xf32, #tpu.memory_space<vmem>>, %arg3: memref<32x64xf32, #tpu.memory_space<vmem>>, %arg4: memref<32x64xf32, #tpu.memory_space<vmem>>, %arg5: memref<64x32xf32, #tpu.memory_space<vmem>>, %arg6: memref<16x32xf32, #tpu.memory_space<vmem>>, %arg7: memref<16x32xf32, #tpu.memory_space<vmem>>) attributes {dimension_semantics = [#tpu.dimension_semantics<parallel>, #tpu.dimension_semantics<arbitrary>], iteration_bounds = array<i64: 1, 1>, scalar_prefetch = 0 : i64, scratch_operands = 1 : i64, tpu.core_type = #tpu.core_type<tc>, window_params = [{transform_indices = @transform_0, window_bounds = array<i64: 16, 32>}, {transform_indices = @transform_1, window_bounds = array<i64: 32, 64>}, {transform_indices = @transform_2, window_bounds = array<i64: 32, 64>}, {transform_indices = @transform_3, window_bounds = array<i64: 64, 32>}, {transform_indices = @transform_4, window_bounds = array<i64: 16, 32>}]} {
    %c0_i32 = arith.constant 0 : i32
    %0 = arith.cmpi eq, %arg1, %c0_i32 : i32
    %1 = arith.extui %0 : i1 to i32
    %c0_i32_0 = arith.constant 0 : i32
    %2 = arith.cmpi ne, %1, %c0_i32_0 : i32
    scf.if %2 {
      %cst_20 = arith.constant 0.000000e+00 : f32
      %30 = vector.broadcast %cst_20 : f32 to vector<16x32xf32>
      %c0_21 = arith.constant 0 : index
      %c0_22 = arith.constant 0 : index
      %31 = vector.load %arg7[%c0_21, %c0_22] : memref<16x32xf32, #tpu.memory_space<vmem>>, vector<16x32xf32>
      tpu.vector_store %arg7[%c0_21, %c0_22], %30 {strides = array<i32>} : memref<16x32xf32, #tpu.memory_space<vmem>>, vector<16x32xf32>,
    } else {
    }
    %c0 = arith.constant 0 : index
    %c0_1 = arith.constant 0 : index
    %3 = vector.load %arg2[%c0, %c0_1] : memref<16x32xf32, #tpu.memory_space<vmem>>, vector<16x32xf32>
    %c0_2 = arith.constant 0 : index
    %c0_3 = arith.constant 0 : index
    %4 = vector.load %arg3[%c0_2, %c0_3] : memref<32x64xf32, #tpu.memory_space<vmem>>, vector<32x64xf32>
    %cst = arith.constant dense<0.000000e+00> : vector<16x64xf32>
    %5 = tpu.matmul %3, %4, %cst {dimension_numbers = #tpu.dot_dimension_numbers<[1], [0], [0], [1], [0, 0, 1, 1], [], []>} : vector<16x32xf32>, vector<32x64xf32>, vector<16x64xf32> -> vector<16x64xf32>
    %c0_4 = arith.constant 0 : index
    %c0_5 = arith.constant 0 : index
    %6 = vector.load %arg4[%c0_4, %c0_5] : memref<32x64xf32, #tpu.memory_space<vmem>>, vector<32x64xf32>
    %cst_6 = arith.constant dense<0.000000e+00> : vector<16x64xf32>
    %7 = tpu.matmul %3, %6, %cst_6 {dimension_numbers = #tpu.dot_dimension_numbers<[1], [0], [0], [1], [0, 0, 1, 1], [], []>} : vector<16x32xf32>, vector<32x64xf32>, vector<16x64xf32> -> vector<16x64xf32>
    %cst_7 = arith.constant 5.000000e-01 : f32
    %8 = vector.broadcast %cst_7 : f32 to vector<16x64xf32>
    %9 = arith.mulf %8, %5 : vector<16x64xf32>
    %cst_8 = arith.constant 4.471500e-02 : f32
    %10 = vector.broadcast %cst_8 : f32 to vector<16x64xf32>
    %11 = arith.mulf %10, %5 : vector<16x64xf32>
    %12 = arith.mulf %11, %5 : vector<16x64xf32>
    %13 = arith.mulf %12, %5 : vector<16x64xf32>
    %14 = arith.addf %5, %13 : vector<16x64xf32>
    %cst_9 = arith.constant 0.797884583 : f32
    %15 = vector.broadcast %cst_9 : f32 to vector<16x64xf32>
    %16 = arith.mulf %15, %14 : vector<16x64xf32>
    %17 = math.tanh %16 : vector<16x64xf32>
    %cst_10 = arith.constant 1.000000e+00 : f32
    %18 = vector.broadcast %cst_10 : f32 to vector<16x64xf32>
    %19 = arith.addf %18, %17 : vector<16x64xf32>
    %20 = arith.mulf %9, %19 : vector<16x64xf32>
    %21 = arith.mulf %20, %7 : vector<16x64xf32>
    %c0_11 = arith.constant 0 : index
    %c0_12 = arith.constant 0 : index
    %22 = vector.load %arg7[%c0_11, %c0_12] : memref<16x32xf32, #tpu.memory_space<vmem>>, vector<16x32xf32>
    %c0_13 = arith.constant 0 : index
    %c0_14 = arith.constant 0 : index
    %23 = vector.load %arg5[%c0_13, %c0_14] : memref<64x32xf32, #tpu.memory_space<vmem>>, vector<64x32xf32>
    %cst_15 = arith.constant dense<0.000000e+00> : vector<16x32xf32>
    %24 = tpu.matmul %21, %23, %cst_15 {dimension_numbers = #tpu.dot_dimension_numbers<[1], [0], [0], [1], [0, 0, 1, 1], [], []>} : vector<16x64xf32>, vector<64x32xf32>, vector<16x32xf32> -> vector<16x32xf32>
    %25 = arith.addf %22, %24 : vector<16x32xf32>
    %c0_16 = arith.constant 0 : index
    %c0_17 = arith.constant 0 : index
    %26 = vector.load %arg7[%c0_16, %c0_17] : memref<16x32xf32, #tpu.memory_space<vmem>>, vector<16x32xf32>
    tpu.vector_store %arg7[%c0_16, %c0_17], %25 {strides = array<i32>} : memref<16x32xf32, #tpu.memory_space<vmem>>, vector<16x32xf32>,
    %c0_i32_18 = arith.constant 0 : i32
    %27 = arith.cmpi eq, %arg1, %c0_i32_18 : i32
    %28 = arith.extui %27 : i1 to i32
    %c0_i32_19 = arith.constant 0 : i32
    %29 = arith.cmpi ne, %28, %c0_i32_19 : i32
    scf.if %29 {
      %c0_20 = arith.constant 0 : index
      %c0_21 = arith.constant 0 : index
      %30 = vector.load %arg7[%c0_20, %c0_21] : memref<16x32xf32, #tpu.memory_space<vmem>>, vector<16x32xf32>
      %c0_22 = arith.constant 0 : index
      %c0_23 = arith.constant 0 : index
      %31 = vector.load %arg6[%c0_22, %c0_23] : memref<16x32xf32, #tpu.memory_space<vmem>>, vector<16x32xf32>
      tpu.vector_store %arg6[%c0_22, %c0_23], %30 {strides = array<i32>} : memref<16x32xf32, #tpu.memory_space<vmem>>, vector<16x32xf32>,
    } else {
    }
    return
  }
  func.func @transform_0(%arg0: i32, %arg1: i32) -> (i32, i32) {
    %c0_i32 = arith.constant 0 : i32
    %c0_i32_0 = arith.constant 0 : i32
    return %arg0, %c0_i32 : i32, i32
  }
  func.func @transform_1(%arg0: i32, %arg1: i32) -> (i32, i32) {
    %c0_i32 = arith.constant 0 : i32
    %c0_i32_0 = arith.constant 0 : i32
    return %c0_i32, %arg1 : i32, i32
  }
  func.func @transform_2(%arg0: i32, %arg1: i32) -> (i32, i32) {
    %c0_i32 = arith.constant 0 : i32
    %c0_i32_0 = arith.constant 0 : i32
    return %c0_i32, %arg1 : i32, i32
  }
  func.func @transform_3(%arg0: i32, %arg1: i32) -> (i32, i32) {
    %c0_i32 = arith.constant 0 : i32
    %c0_i32_0 = arith.constant 0 : i32
    return %arg1, %c0_i32 : i32, i32
  }
  func.func @transform_4(%arg0: i32, %arg1: i32) -> (i32, i32) {
    %c0_i32 = arith.constant 0 : i32
    %c0_i32_0 = arith.constant 0 : i32
    return %arg0, %c0_i32 : i32, i32
  }
}

</mosaic_0001>

<llo_original>
// kernel: t5_feedforward.1
$region0: #{t5_feedforward.1}
  #allocation0 [shape = 'u32[]', space=smem, size = 0x4, offset = 0x4, fixed_abs, tag = 'smem constant byte address 0x4 - core index']
  #allocation1 [shape = 'u32[144,128]{1,0:T(1,128)}', space=vmem, size = 0x12000, scoped, tag = 'internal scratch']
  #allocation2 [shape = 'f32[16,32]{1,0:T(8,128)}', space=vmem, size = 0x2000, scoped, tag = 'scratch operand']
  %s0 = inlined_call_operand.vmem [shape: f32[16,32], index: 0, kind: input, shape index: {}]
  %s1 = inlined_call_operand.vmem [shape: f32[32,64], index: 1, kind: input, shape index: {}]
  %s2 = inlined_call_operand.vmem [shape: f32[32,64], index: 2, kind: input, shape index: {}]
  %s3 = inlined_call_operand.vmem [shape: f32[64,32], index: 3, kind: input, shape index: {}]
  %s4 = inlined_call_operand.hbm [shape: f32[16,32], index: 4, kind: output, shape index: {}]
  %s5 = sld [smem:[#allocation0]]
  $region34: #{t5_feedforward.1} parent=0
    _
  %s7 = ssub.s32 1, %s5
  %s8 = scalar_select 0, %s7, %s5
  $region1: #{t5_feedforward.1} parent=0
    #allocation3 [shape = 'u8[8192]{0}', space=vmem, size = 0x2000, scoped, tag = 'output window, operand 0, single buffered']
    #allocation4 [shape = 's32[1]{0}', space=sflag, size = 0x4, scoped, tag = 'scoped memory for t5_feedforward.1']
    %9 = vsyncpa [#allocation4], 0
    // Predicated region
    $region2: #{t5_feedforward.1} parent=1 // pred_check
      _
    $region3: #{t5_feedforward.1} parent=1 // pred_check_branch
      %11 = sbr.rel (0) target = $region5
    $region4: #{t5_feedforward.1} parent=1 // pred_region
      _
    $region5: #{t5_feedforward.1} parent=1 // pred_fallthru
      _
    // Predicated region
    $region6: #{t5_feedforward.1} parent=1 // pred_check
      _
    $region7: #{t5_feedforward.1} parent=1 // pred_check_branch
      %13 = sbr.rel (0) target = $region9
    $region8: #{t5_feedforward.1} parent=1 // pred_region
      _
    $region9: #{t5_feedforward.1} parent=1 // pred_fallthru
      _
    // Predicated region
    $region10: #{t5_feedforward.1} parent=1 // pred_check
      _
    $region11: #{t5_feedforward.1} parent=1 // pred_check_branch
      %15 = sbr.rel (0) target = $region13
    $region12: #{t5_feedforward.1} parent=1 // pred_region
      _
    $region13: #{t5_feedforward.1} parent=1 // pred_fallthru
      _
    // Predicated region
    $region14: #{t5_feedforward.1} parent=1 // pred_check
      _
    $region15: #{t5_feedforward.1} parent=1 // pred_check_branch
      %17 = sbr.rel (0) target = $region17
    $region16: #{t5_feedforward.1} parent=1 // pred_region
      _
    $region17: #{t5_feedforward.1} parent=1 // pred_fallthru
      _
    %p18 = scmp.eq.s32.totalorder 0, 0
    // Predicated region
    $region18: #{t5_feedforward.1} parent=1 // pred_check
      %p19 = pneg %p18
    $region19: #{t5_feedforward.1} parent=1 // pred_check_branch
      %21 = sbr.rel (%p19) target = $region21
    $region20: #{t5_feedforward.1} parent=1 // pred_region
      %vm22 = vcmask 261120
      %23 = vst.msk [vmem:[#allocation2] sm:$0xff] %vm22, 0.0
      %24 = vst.msk [vmem:[#allocation2 + $0x8] sm:$0xff] %vm22, 0.0
    $region21: #{t5_feedforward.1} parent=1 // pred_fallthru
      _
    %v25 = vld [vmem:[%s0] sm:$0xff]
    %v26 = vld [vmem:[%s0 + $0x8] sm:$0xff]
    %v27 = vld [vmem:[%s1] sm:$0xff]
    %v28 = vld [vmem:[%s1 + $0x8] sm:$0xff]
    %v29 = vld [vmem:[%s1 + $0x10] sm:$0xff]
    %v30 = vld [vmem:[%s1 + $0x18] sm:$0xff]
    %vm31 = vcmask 261120
    %v33 = vsel %vm31, %v25, 0
    %v36 = vsel %vm31, %v26, 0
    %38 = vmatprep.subr.mxu0 0.0
    %39 = vmatpush1.msra.mxu0 0.0
    %40 = vmatprep.subr.mxu0 0.0
    %41 = vmatpush1.msra.mxu0 0.0
    %42 = vmatprep.subr.mxu0 0.0
    %43 = vmatpush1.msra.mxu0 0.0
    %44 = vmatprep.subr.mxu0 0.0
    %45 = vmatpush1.msra.mxu0 0.0
    %46 = vmatprep.subr.mxu0 0.0
    %47 = vmatpush1.msra.mxu0 0.0
    %48 = vmatprep.subr.mxu0 0.0
    %49 = vmatpush1.msra.mxu0 0.0
    %50 = vmatprep.subr.mxu0 0.0
    %51 = vmatpush1.msra.mxu0 0.0
    %52 = vmatprep.subr.mxu0 0.0
    %53 = vmatpush1.msra.mxu0 0.0
    %54 = vmatprep.subr.mxu0 0.0
    %55 = vmatpush1.msra.mxu0 0.0
    %56 = vmatprep.subr.mxu0 0.0
    %57 = vmatpush1.msra.mxu0 0.0
    %58 = vmatprep.subr.mxu0 0.0
    %59 = vmatpush1.msra.mxu0 0.0
    %60 = vmatprep.subr.mxu0 0.0
    %61 = vmatpush1.msra.mxu0 0.0
    %62 = vmatprep.subr.mxu0 0.0
    %63 = vmatpush1.msra.mxu0 %v30
    %64 = vmatprep.subr.mxu0 0.0
    %65 = vmatpush1.msra.mxu0 %v29
    %66 = vmatprep.subr.mxu0 0.0
    %67 = vmatpush1.msra.mxu0 %v28
    %68 = vmatprep.subr.mxu0 0.0
    %69 = vmatpush1.msra.mxu0 %v27
    %70 = vmatprep.subr.mxu0 0.0
    %71 = vmatpush2.msra.mxu0 0.0
    %72 = vmatprep.subr.mxu0 0.0
    %73 = vmatpush2.msra.mxu0 0.0
    %74 = vmatprep.subr.mxu0 0.0
    %75 = vmatpush2.msra.mxu0 0.0
    %76 = vmatprep.subr.mxu0 0.0
    %77 = vmatpush2.msra.mxu0 0.0
    %78 = vmatprep.subr.mxu0 0.0
    %79 = vmatpush2.msra.mxu0 0.0
    %80 = vmatprep.subr.mxu0 0.0
    %81 = vmatpush2.msra.mxu0 0.0
    %82 = vmatprep.subr.mxu0 0.0
    %83 = vmatpush2.msra.mxu0 0.0
    %84 = vmatprep.subr.mxu0 0.0
    %85 = vmatpush2.msra.mxu0 0.0
    %86 = vmatprep.subr.mxu0 0.0
    %87 = vmatpush2.msra.mxu0 0.0
    %88 = vmatprep.subr.mxu0 0.0
    %89 = vmatpush2.msra.mxu0 0.0
    %90 = vmatprep.subr.mxu0 0.0
    %91 = vmatpush2.msra.mxu0 0.0
    %92 = vmatprep.subr.mxu0 0.0
    %93 = vmatpush2.msra.mxu0 0.0
    %94 = vmatprep.subr.mxu0 0.0
    %95 = vmatpush2.msra.mxu0 0.0
    %96 = vmatprep.subr.mxu0 0.0
    %97 = vmatpush2.msra.mxu0 0.0
    %98 = vmatprep.subr.mxu0 0.0
    %99 = vmatpush2.msra.mxu0 0.0
    %100 = vmatprep.subr.mxu0 0.0
    %101 = vmatpush2.msra.mxu0 0.0
    %102 = vmatprep.mubr.f32.mxu0 0.0
    %103 = vmatmul.mubr.f32.gmra.mxu0 %v33
    %v104 = vpop.f32.mrf.mxu0
    %v105 = vadd.f32 0.0, %v104
    %v106 = vpop.f32.mrf.mxu0
    %107 = vmatprep.mubr.f32.mxu0 0.0
    %108 = vmatmul.mubr.f32.gmra.mxu0 %v36
    %v109 = vpop.f32.mrf.mxu0
    %v110 = vadd.f32 0.0, %v109
    %v111 = vpop.f32.mrf.mxu0
    %112 = vdwg.mxu0
    %v113 = vld [vmem:[%s2] sm:$0xff]
    %v114 = vld [vmem:[%s2 + $0x8] sm:$0xff]
    %v115 = vld [vmem:[%s2 + $0x10] sm:$0xff]
    %v116 = vld [vmem:[%s2 + $0x18] sm:$0xff]
    %117 = vmatprep.subr.mxu0 0.0
    %118 = vmatpush1.msra.mxu0 0.0
    %119 = vmatprep.subr.mxu0 0.0
    %120 = vmatpush1.msra.mxu0 0.0
    %121 = vmatprep.subr.mxu0 0.0
    %122 = vmatpush1.msra.mxu0 0.0
    %123 = vmatprep.subr.mxu0 0.0
    %124 = vmatpush1.msra.mxu0 0.0
    %125 = vmatprep.subr.mxu0 0.0
    %126 = vmatpush1.msra.mxu0 0.0
    %127 = vmatprep.subr.mxu0 0.0
    %128 = vmatpush1.msra.mxu0 0.0
    %129 = vmatprep.subr.mxu0 0.0
    %130 = vmatpush1.msra.mxu0 0.0
    %131 = vmatprep.subr.mxu0 0.0
    %132 = vmatpush1.msra.mxu0 0.0
    %133 = vmatprep.subr.mxu0 0.0
    %134 = vmatpush1.msra.mxu0 0.0
    %135 = vmatprep.subr.mxu0 0.0
    %136 = vmatpush1.msra.mxu0 0.0
    %137 = vmatprep.subr.mxu0 0.0
    %138 = vmatpush1.msra.mxu0 0.0
    %139 = vmatprep.subr.mxu0 0.0
    %140 = vmatpush1.msra.mxu0 0.0
    %141 = vmatprep.subr.mxu0 0.0
    %142 = vmatpush1.msra.mxu0 %v116
    %143 = vmatprep.subr.mxu0 0.0
    %144 = vmatpush1.msra.mxu0 %v115
    %145 = vmatprep.subr.mxu0 0.0
    %146 = vmatpush1.msra.mxu0 %v114
    %147 = vmatprep.subr.mxu0 0.0
    %148 = vmatpush1.msra.mxu0 %v113
    %149 = vmatprep.subr.mxu0 0.0
    %150 = vmatpush2.msra.mxu0 0.0
    %151 = vmatprep.subr.mxu0 0.0
    %152 = vmatpush2.msra.mxu0 0.0
    %153 = vmatprep.subr.mxu0 0.0
    %154 = vmatpush2.msra.mxu0 0.0
    %155 = vmatprep.subr.mxu0 0.0
    %156 = vmatpush2.msra.mxu0 0.0
    %157 = vmatprep.subr.mxu0 0.0
    %158 = vmatpush2.msra.mxu0 0.0
    %159 = vmatprep.subr.mxu0 0.0
    %160 = vmatpush2.msra.mxu0 0.0
    %161 = vmatprep.subr.mxu0 0.0
    %162 = vmatpush2.msra.mxu0 0.0
    %163 = vmatprep.subr.mxu0 0.0
    %164 = vmatpush2.msra.mxu0 0.0
    %165 = vmatprep.subr.mxu0 0.0
    %166 = vmatpush2.msra.mxu0 0.0
    %167 = vmatprep.subr.mxu0 0.0
    %168 = vmatpush2.msra.mxu0 0.0
    %169 = vmatprep.subr.mxu0 0.0
    %170 = vmatpush2.msra.mxu0 0.0
    %171 = vmatprep.subr.mxu0 0.0
    %172 = vmatpush2.msra.mxu0 0.0
    %173 = vmatprep.subr.mxu0 0.0
    %174 = vmatpush2.msra.mxu0 0.0
    %175 = vmatprep.subr.mxu0 0.0
    %176 = vmatpush2.msra.mxu0 0.0
    %177 = vmatprep.subr.mxu0 0.0
    %178 = vmatpush2.msra.mxu0 0.0
    %179 = vmatprep.subr.mxu0 0.0
    %180 = vmatpush2.msra.mxu0 0.0
    %181 = vmatprep.mubr.f32.mxu0 0.0
    %182 = vmatmul.mubr.f32.gmra.mxu0 %v33
    %v183 = vpop.f32.mrf.mxu0
    %v184 = vadd.f32 0.0, %v183
    %v185 = vpop.f32.mrf.mxu0
    %186 = vmatprep.mubr.f32.mxu0 0.0
    %187 = vmatmul.mubr.f32.gmra.mxu0 %v36
    %v188 = vpop.f32.mrf.mxu0
    %v189 = vadd.f32 0.0, %v188
    %v190 = vpop.f32.mrf.mxu0
    %191 = vdwg.mxu0
    %v192 = vmul.f32 %v105, 0.5
    %v193 = vmul.f32 %v110, 0.5
    %v194 = vmul.f32 %v105, 0.044715
    %v195 = vmul.f32 %v110, 0.044715
    %v196 = vmul.f32 %v194, %v105
    %v197 = vmul.f32 %v195, %v110
    %v198 = vmul.f32 %v196, %v105
    %v199 = vmul.f32 %v197, %v110
    %v200 = vadd.f32 %v105, %v198
    %v201 = vadd.f32 %v110, %v199
    %v202 = vmul.f32 %v200, 0.7978846
    %v203 = vmul.f32 %v201, 0.7978846
    %v204 = vtanh.pop %v202
    %v205 = vtanh.pop %v203
    %v206 = vadd.f32 %v204, 1.0
    %v207 = vadd.f32 %v205, 1.0
    %v208 = vmul.f32 %v192, %v206
    %v209 = vmul.f32 %v193, %v207
    %v210 = vmul.f32 %v208, %v184
    %v211 = vmul.f32 %v209, %v189
    %v212 = vld [vmem:[#allocation2] sm:$0xff]
    %v213 = vld [vmem:[#allocation2 + $0x8] sm:$0xff]
    %v214 = vld [vmem:[%s3] sm:$0xff]
    %v215 = vld [vmem:[%s3 + $0x8] sm:$0xff]
    %v216 = vld [vmem:[%s3 + $0x10] sm:$0xff]
    %v217 = vld [vmem:[%s3 + $0x18] sm:$0xff]
    %v218 = vld [vmem:[%s3 + $0x20] sm:$0xff]
    %v219 = vld [vmem:[%s3 + $0x28] sm:$0xff]
    %v220 = vld [vmem:[%s3 + $0x30] sm:$0xff]
    %v221 = vld [vmem:[%s3 + $0x38] sm:$0xff]
    %vm222 = vcmask 523264
    %v224 = vsel %vm222, %v210, 0
    %v227 = vsel %vm222, %v211, 0
    %229 = vmatprep.subr.mxu0 0.0
    %230 = vmatpush1.msra.mxu0 0.0
    %231 = vmatprep.subr.mxu0 0.0
    %232 = vmatpush1.msra.mxu0 0.0
    %233 = vmatprep.subr.mxu0 0.0
    %234 = vmatpush1.msra.mxu0 0.0
    %235 = vmatprep.subr.mxu0 0.0
    %236 = vmatpush1.msra.mxu0 0.0
    %237 = vmatprep.subr.mxu0 0.0
    %238 = vmatpush1.msra.mxu0 0.0
    %239 = vmatprep.subr.mxu0 0.0
    %240 = vmatpush1.msra.mxu0 0.0
    %241 = vmatprep.subr.mxu0 0.0
    %242 = vmatpush1.msra.mxu0 0.0
    %243 = vmatprep.subr.mxu0 0.0
    %244 = vmatpush1.msra.mxu0 0.0
    %245 = vmatprep.subr.mxu0 0.0
    %246 = vmatpush1.msra.mxu0 %v221
    %247 = vmatprep.subr.mxu0 0.0
    %248 = vmatpush1.msra.mxu0 %v220
    %249 = vmatprep.subr.mxu0 0.0
    %250 = vmatpush1.msra.mxu0 %v219
    %251 = vmatprep.subr.mxu0 0.0
    %252 = vmatpush1.msra.mxu0 %v218
    %253 = vmatprep.subr.mxu0 0.0
    %254 = vmatpush1.msra.mxu0 %v217
    %255 = vmatprep.subr.mxu0 0.0
    %256 = vmatpush1.msra.mxu0 %v216
    %257 = vmatprep.subr.mxu0 0.0
    %258 = vmatpush1.msra.mxu0 %v215
    %259 = vmatprep.subr.mxu0 0.0
    %260 = vmatpush1.msra.mxu0 %v214
    %261 = vmatprep.subr.mxu0 0.0
    %262 = vmatpush2.msra.mxu0 0.0
    %263 = vmatprep.subr.mxu0 0.0
    %264 = vmatpush2.msra.mxu0 0.0
    %265 = vmatprep.subr.mxu0 0.0
    %266 = vmatpush2.msra.mxu0 0.0
    %267 = vmatprep.subr.mxu0 0.0
    %268 = vmatpush2.msra.mxu0 0.0
    %269 = vmatprep.subr.mxu0 0.0
    %270 = vmatpush2.msra.mxu0 0.0
    %271 = vmatprep.subr.mxu0 0.0
    %272 = vmatpush2.msra.mxu0 0.0
    %273 = vmatprep.subr.mxu0 0.0
    %274 = vmatpush2.msra.mxu0 0.0
    %275 = vmatprep.subr.mxu0 0.0
    %276 = vmatpush2.msra.mxu0 0.0
    %277 = vmatprep.subr.mxu0 0.0
    %278 = vmatpush2.msra.mxu0 0.0
    %279 = vmatprep.subr.mxu0 0.0
    %280 = vmatpush2.msra.mxu0 0.0
    %281 = vmatprep.subr.mxu0 0.0
    %282 = vmatpush2.msra.mxu0 0.0
    %283 = vmatprep.subr.mxu0 0.0
    %284 = vmatpush2.msra.mxu0 0.0
    %285 = vmatprep.subr.mxu0 0.0
    %286 = vmatpush2.msra.mxu0 0.0
    %287 = vmatprep.subr.mxu0 0.0
    %288 = vmatpush2.msra.mxu0 0.0
    %289 = vmatprep.subr.mxu0 0.0
    %290 = vmatpush2.msra.mxu0 0.0
    %291 = vmatprep.subr.mxu0 0.0
    %292 = vmatpush2.msra.mxu0 0.0
    %293 = vmatprep.mubr.f32.mxu0 0.0
    %294 = vmatmul.mubr.f32.gmra.mxu0 %v224
    %v295 = vpop.f32.mrf.mxu0
    %v296 = vadd.f32 0.0, %v295
    %v297 = vpop.f32.mrf.mxu0
    %298 = vmatprep.mubr.f32.mxu0 0.0
    %299 = vmatmul.mubr.f32.gmra.mxu0 %v227
    %v300 = vpop.f32.mrf.mxu0
    %v301 = vadd.f32 0.0, %v300
    %v302 = vpop.f32.mrf.mxu0
    %303 = vdwg.mxu0
    %v304 = vadd.f32 %v212, %v296
    %v305 = vadd.f32 %v213, %v301
    %306 = vst.msk [vmem:[#allocation2] sm:$0xff] %vm31, %v304
    %307 = vst.msk [vmem:[#allocation2 + $0x8] sm:$0xff] %vm31, %v305
    // Predicated region
    $region22: #{t5_feedforward.1} parent=1 // pred_check
      %p308 = pneg %p18
    $region23: #{t5_feedforward.1} parent=1 // pred_check_branch
      %310 = sbr.rel (%p308) target = $region25
    $region24: #{t5_feedforward.1} parent=1 // pred_region
      %v311 = vld [vmem:[#allocation2] sm:$0xff]
      %v312 = vld [vmem:[#allocation2 + $0x8] sm:$0xff]
      %313 = vst.msk [vmem:[#allocation3] sm:$0xff] %vm31, %v311
      %314 = vst.msk [vmem:[#allocation3 + $0x8] sm:$0xff] %vm31, %v312
    $region25: #{t5_feedforward.1} parent=1 // pred_fallthru
      _
    // Predicated region
    $region26: #{t5_feedforward.1} parent=1 // pred_check
      _
    $region27: #{t5_feedforward.1} parent=1 // pred_check_branch
      %316 = sbr.rel (0) target = $region29
    $region28: #{t5_feedforward.1} parent=1 // pred_region
      %s318 = ssub.s32 256, 256
      %319 = vsyncadd [#allocation4], %s318
      %s320 = sshll.u32 [#allocation3], 4
      %s321 = int_to_ptr.vmem [resolvable:$true] %s320
      %326 = dma.vmem_to_hbm [thread:$0]  %s321, 256, %s4, [#allocation4], 128, 128, 8
    $region29: #{t5_feedforward.1} parent=1 // pred_fallthru
      _
    // Predicated region
    $region30: #{t5_feedforward.1} parent=1 // pred_check
      _
    $region31: #{t5_feedforward.1} parent=1 // pred_check_branch
      %328 = sbr.rel (0) target = $region33
    $region32: #{t5_feedforward.1} parent=1 // pred_region
      %329 = dma.done [#allocation4], 256
    $region33: #{t5_feedforward.1} parent=1 // pred_fallthru
      _
    %330 = vsyncpa [#allocation4], 1

</llo_original>
